<compile_context>
chip_gen: v6e
topology: v6e:2x2x1
jax: 0.10.0
libtpu: 0.0.40
codegen_flags: <defaults>
</compile_context>

<pallas_src>
import functools
import math

import jax
import jax.numpy as jnp
from jax import lax
from jax.experimental import pallas as pl
from jax.experimental.pallas import tpu as pltpu


def _round_up(n, m):
    return ((n + m - 1) // m) * m


# ---------------------------------------------------------------------------
# Pallas kernel: one (batch * time) slice per grid step.
# ---------------------------------------------------------------------------
def _mixed_attention_kernel(x_ref, cop_ref, wqkv_ref, bqkv_ref,
                            att_ref, wts_ref, logits_ref,
                            *, seq_len, d_pad, inv_dk):
    x = x_ref[0]                                               # (Sp, Dp)

    # Fused Q/K/V projection: one MXU matmul instead of three small ones.
    qkv = jnp.dot(x, wqkv_ref[...], preferred_element_type=jnp.float32)
    qkv = qkv + bqkv_ref[...]                                  # (Sp, 3*Dp)
    q = qkv[:, 0 * d_pad:1 * d_pad]
    k = qkv[:, 1 * d_pad:2 * d_pad]
    v = qkv[:, 2 * d_pad:3 * d_pad]

    # q @ k^T via dot_general (no explicit transpose materialized).
    logits = lax.dot_general(q, k, (((1,), (1,)), ((), ())),
                             preferred_element_type=jnp.float32)  # (Sp, Sp)
    logits_ref[0] = logits.astype(logits_ref.dtype)            # original_logits

    # Copula modulation + compile-time 1/sqrt(d_model + 1e-7) scale.
    scaled = logits * cop_ref[0] * inv_dk
    sp = scaled.shape[-1]
    if seq_len < sp:  # static branch: mask padded key columns out of softmax
        col = lax.broadcasted_iota(jnp.int32, (sp, sp), 1)
        scaled = jnp.where(col < seq_len, scaled, -1e30)

    mx = jnp.max(scaled, axis=-1, keepdims=True)
    e = jnp.exp(scaled - mx)
    denom = jnp.sum(e, axis=-1, keepdims=True)
    wts = e * pl.reciprocal(denom, approx=True)                # EUP, not VPU div
    wts_ref[0] = wts.astype(wts_ref.dtype)                     # matrix_weights

    # TODO(synk): nn.Dropout(0.1) on the attention weights is treated as
    # eval-mode identity (no RNG / rescaling inside the kernel).
    att = jnp.dot(wts, v, preferred_element_type=jnp.float32)  # (Sp, Dp)
    att_ref[0] = att.astype(att_ref.dtype)


# ---------------------------------------------------------------------------
# Host-side wrappers
# ---------------------------------------------------------------------------
def prepare_qkv_params(wq, bq, wk, bk, wv, bv):
    """Fuse + pad the three nn.Linear layers once (outside the jitted graph).

    PyTorch Linear weight is (out_features, in_features); y = x @ W^T + b.
    Returns (w_qkv, b_qkv) with shapes (Dp, 3*Dp) and (1, 3*Dp), Dp = ceil128(D).
    """
    d_model = wq.shape[0]
    d_pad = _round_up(d_model, 128)

    def pad_w(w):
        return jnp.pad(w.T.astype(jnp.float32),
                       ((0, d_pad - d_model), (0, d_pad - d_model)))

    def pad_b(b):
        return jnp.pad(b.astype(jnp.float32), (0, d_pad - d_model))

    w_qkv = jnp.concatenate([pad_w(wq), pad_w(wk), pad_w(wv)], axis=1)
    b_qkv = jnp.concatenate([pad_b(bq), pad_b(bk), pad_b(bv)]).reshape(1, 3 * d_pad)
    return w_qkv, b_qkv


def mixed_self_attention(x, x_copula, w_qkv, b_qkv):
    """Mixed_SelfAttention.forward.

    x:        (batch, d_model, seq_len, time_len)
    x_copula: broadcastable to (batch, time_len, seq_len, seq_len)
    Returns (attention_output, matrix_weights, original_logits).
    """
    B, D, S, T = x.shape
    Dp = w_qkv.shape[0]
    Sp = _round_up(S, 8)
    BT = B * T

    # x.transpose(3, 1) -> (B, T, S, D), flattened over (B, T), padded to tiles.
    xt = jnp.transpose(x, (0, 3, 2, 1)).reshape(BT, S, D).astype(jnp.float32)
    x_p = jnp.pad(xt, ((0, 0), (0, Sp - S), (0, Dp - D)))

    cop = jnp.broadcast_to(x_copula, (B, T, S, S)).reshape(BT, S, S)
    cop_p = jnp.pad(cop.astype(jnp.float32), ((0, 0), (0, Sp - S), (0, Sp - S)))

    inv_dk = 1.0 / math.sqrt(D + 1e-07)
    kernel = functools.partial(_mixed_attention_kernel,
                               seq_len=S, d_pad=Dp, inv_dk=inv_dk)

    att_p, wts_p, logits_p = pl.pallas_call(
        kernel,
        out_shape=(
            jax.ShapeDtypeStruct((BT, Sp, Dp), jnp.float32),   # attention out
            jax.ShapeDtypeStruct((BT, Sp, Sp), jnp.float32),   # softmax weights
            jax.ShapeDtypeStruct((BT, Sp, Sp), jnp.float32),   # original logits
        ),
        grid=(BT,),
        in_specs=[
            pl.BlockSpec((1, Sp, Dp), lambda b: (b, 0, 0)),    # x slice
            pl.BlockSpec((1, Sp, Sp), lambda b: (b, 0, 0)),    # copula slice
            pl.BlockSpec((Dp, 3 * Dp), lambda b: (0, 0)),      # fused W (resident)
            pl.BlockSpec((1, 3 * Dp), lambda b: (0, 0)),       # fused bias (resident)
        ],
        out_specs=(
            pl.BlockSpec((1, Sp, Dp), lambda b: (b, 0, 0)),
            pl.BlockSpec((1, Sp, Sp), lambda b: (b, 0, 0)),
            pl.BlockSpec((1, Sp, Sp), lambda b: (b, 0, 0)),
        ),
        compiler_params=pltpu.CompilerParams(
            dimension_semantics=("parallel",)),
    )(x_p, cop_p, w_qkv, b_qkv)

    att = att_p[:, :S, :D].reshape(B, T, S, D)
    wts = wts_p[:, :S, :S].reshape(B, T, S, S)
    ologits = logits_p[:, :S, :S].reshape(B, T, S, S)
    return att, wts, ologits


# ---------------------------------------------------------------------------
# Pure-JAX reference (mirrors the PyTorch forward, eval-mode dropout)
# ---------------------------------------------------------------------------
def _reference(x, x_copula, wq, bq, wk, bk, wv, bv):
    B, D, S, T = x.shape
    xt = jnp.transpose(x, (0, 3, 2, 1))                        # (B, T, S, D)
    q = xt @ wq.T + bq
    k = xt @ wk.T + bk
    v = xt @ wv.T + bv
    logits = jnp.einsum("btsd,btkd->btsk", q, k)
    original_logits = logits
    logits = logits * jnp.broadcast_to(x_copula, (B, T, S, S))
    weights = jax.nn.softmax(logits / math.sqrt(D + 1e-07), axis=-1)
    att = jnp.einsum("btsk,btkd->btsd", weights, v)
    return att, weights, original_logits


if __name__ == "__main__":
    B, D, S, T = 2, 32, 8, 4          # (batch, d_model, seq_len, time_len)

    key = jax.random.PRNGKey(0)
    kx, kc, kq, kk, kv, kbq, kbk, kbv = jax.random.split(key, 8)
    bound = 1.0 / math.sqrt(D)
    x = jax.random.normal(kx, (B, D, S, T), jnp.float32)
    x_copula = jax.random.uniform(kc, (B, T, S, S), jnp.float32, 0.5, 1.5)
    wq = jax.random.uniform(kq, (D, D), jnp.float32, -bound, bound)
    wk = jax.random.uniform(kk, (D, D), jnp.float32, -bound, bound)
    wv = jax.random.uniform(kv, (D, D), jnp.float32, -bound, bound)
    bq = jax.random.uniform(kbq, (D,), jnp.float32, -bound, bound)
    bk = jax.random.uniform(kbk, (D,), jnp.float32, -bound, bound)
    bv = jax.random.uniform(kbv, (D,), jnp.float32, -bound, bound)

    # Fuse / transpose / pad the weights once, outside the jitted forward.
    w_qkv, b_qkv = prepare_qkv_params(wq, bq, wk, bk, wv, bv)

    fwd = jax.jit(mixed_self_attention)
    att, wts, ologits = fwd(x, x_copula, w_qkv, b_qkv)
    jax.block_until_ready((att, wts, ologits))

    assert att.shape == (B, T, S, D)
    assert wts.shape == (B, T, S, S)
    assert ologits.shape == (B, T, S, S)

    # Sanity check against the pure-JAX reference (loose tolerance: both paths
    # use the TPU's default bf16-pass f32 matmul precision).
    ref_att, ref_wts, ref_ol = _reference(x, x_copula, wq, bq, wk, bk, wv, bv)
    assert bool(jnp.allclose(att, ref_att, rtol=5e-2, atol=5e-2))
    assert bool(jnp.allclose(wts, ref_wts, rtol=5e-2, atol=5e-2))
    assert bool(jnp.allclose(ologits, ref_ol, rtol=5e-2, atol=5e-2))

    print("KERNEL_OK")
</pallas_src>

<mosaic_0001>
module attributes {stable_mosaic.version = 11 : i64} {
  func.func @_mixed_attention_kernel(%arg0: i32, %arg1: memref<1x8x128xf32, #tpu.memory_space<vmem>>, %arg2: memref<1x8x8xf32, #tpu.memory_space<vmem>>, %arg3: memref<128x384xf32, #tpu.memory_space<vmem>>, %arg4: memref<1x384xf32, #tpu.memory_space<vmem>>, %arg5: memref<1x8x128xf32, #tpu.memory_space<vmem>>, %arg6: memref<1x8x8xf32, #tpu.memory_space<vmem>>, %arg7: memref<1x8x8xf32, #tpu.memory_space<vmem>>) attributes {dimension_semantics = [#tpu.dimension_semantics<parallel>], iteration_bounds = array<i64: 8>, scalar_prefetch = 0 : i64, scratch_operands = 0 : i64, tpu.core_type = #tpu.core_type<tc>, window_params = [{transform_indices = @transform_0, window_bounds = array<i64: 1, 8, 128>}, {transform_indices = @transform_1, window_bounds = array<i64: 1, 8, 8>}, {pipeline_mode = #tpu.pipeline_mode<synchronous>, transform_indices = @transform_2, window_bounds = array<i64: 128, 384>}, {pipeline_mode = #tpu.pipeline_mode<synchronous>, transform_indices = @transform_3, window_bounds = array<i64: 1, 384>}, {transform_indices = @transform_4, window_bounds = array<i64: 1, 8, 128>}, {transform_indices = @transform_5, window_bounds = array<i64: 1, 8, 8>}, {transform_indices = @transform_6, window_bounds = array<i64: 1, 8, 8>}]} {
    %c0 = arith.constant 0 : index
    %c0_0 = arith.constant 0 : index
    %c0_1 = arith.constant 0 : index
    %0 = vector.load %arg1[%c0, %c0_0, %c0_1] : memref<1x8x128xf32, #tpu.memory_space<vmem>>, vector<1x8x128xf32>
    %1 = vector.shape_cast %0 : vector<1x8x128xf32> to vector<8x128xf32>
    %c0_2 = arith.constant 0 : index
    %c0_3 = arith.constant 0 : index
    %2 = vector.load %arg3[%c0_2, %c0_3] : memref<128x384xf32, #tpu.memory_space<vmem>>, vector<128x384xf32>
    %cst = arith.constant dense<0.000000e+00> : vector<8x384xf32>
    %3 = tpu.matmul %1, %2, %cst {dimension_numbers = #tpu.dot_dimension_numbers<[1], [0], [0], [1], [0, 0, 1, 1], [], []>} : vector<8x128xf32>, vector<128x384xf32>, vector<8x384xf32> -> vector<8x384xf32>
    %c0_4 = arith.constant 0 : index
    %c0_5 = arith.constant 0 : index
    %4 = vector.load %arg4[%c0_4, %c0_5] : memref<1x384xf32, #tpu.memory_space<vmem>>, vector<1x384xf32>
    %5 = vector.broadcast %4 : vector<1x384xf32> to vector<8x384xf32>
    %6 = arith.addf %3, %5 : vector<8x384xf32>
    %7 = vector.extract_strided_slice %6 {offsets = [0, 0], sizes = [8, 128], strides = [1, 1]} : vector<8x384xf32> to vector<8x128xf32>
    %8 = vector.extract_strided_slice %6 {offsets = [0, 128], sizes = [8, 128], strides = [1, 1]} : vector<8x384xf32> to vector<8x128xf32>
    %9 = vector.extract_strided_slice %6 {offsets = [0, 256], sizes = [8, 128], strides = [1, 1]} : vector<8x384xf32> to vector<8x128xf32>
    %cst_6 = arith.constant dense<0.000000e+00> : vector<8x8xf32>
    %10 = tpu.matmul %7, %8, %cst_6 {dimension_numbers = #tpu.dot_dimension_numbers<[1], [1], [0], [0], [0, 0, 1, 0], [], []>} : vector<8x128xf32>, vector<8x128xf32>, vector<8x8xf32> -> vector<8x8xf32>
    %c0_7 = arith.constant 0 : index
    %c0_8 = arith.constant 0 : index
    %c0_9 = arith.constant 0 : index
    %11 = vector.load %arg7[%c0_7, %c0_8, %c0_9] : memref<1x8x8xf32, #tpu.memory_space<vmem>>, vector<1x8x8xf32>
    %12 = vector.shape_cast %11 : vector<1x8x8xf32> to vector<8x8xf32>
    %13 = vector.shape_cast %10 : vector<8x8xf32> to vector<1x8x8xf32>
    tpu.vector_store %arg7[%c0_7, %c0_8, %c0_9], %13 {strides = array<i32>} : memref<1x8x8xf32, #tpu.memory_space<vmem>>, vector<1x8x8xf32>,
    %c0_10 = arith.constant 0 : index
    %c0_11 = arith.constant 0 : index
    %c0_12 = arith.constant 0 : index
    %14 = vector.load %arg2[%c0_10, %c0_11, %c0_12] : memref<1x8x8xf32, #tpu.memory_space<vmem>>, vector<1x8x8xf32>
    %15 = vector.shape_cast %14 : vector<1x8x8xf32> to vector<8x8xf32>
    %16 = arith.mulf %10, %15 : vector<8x8xf32>
    %cst_13 = arith.constant 0.176776692 : f32
    %17 = vector.broadcast %cst_13 : f32 to vector<8x8xf32>
    %18 = arith.mulf %16, %17 : vector<8x8xf32>
    %cst_14 = arith.constant dense<0xFF800000> : vector<8xf32>
    %19 = vector.multi_reduction <maximumf>, %18, %cst_14 [1] : vector<8x8xf32> to vector<8xf32>
    %20 = vector.shape_cast %19 : vector<8xf32> to vector<8x1xf32>
    %21 = vector.broadcast %20 : vector<8x1xf32> to vector<8x8xf32>
    %22 = arith.subf %18, %21 : vector<8x8xf32>
    %23 = math.exp %22 : vector<8x8xf32>
    %cst_15 = arith.constant dense<0.000000e+00> : vector<8xf32>
    %24 = vector.multi_reduction <add>, %23, %cst_15 [1] : vector<8x8xf32> to vector<8xf32>
    %25 = vector.shape_cast %24 : vector<8xf32> to vector<8x1xf32>
    %26 = tpu.reciprocal %25 {approx = true} : vector<8x1xf32> -> vector<8x1xf32>
    %27 = vector.broadcast %26 : vector<8x1xf32> to vector<8x8xf32>
    %28 = arith.mulf %23, %27 : vector<8x8xf32>
    %c0_16 = arith.constant 0 : index
    %c0_17 = arith.constant 0 : index
    %c0_18 = arith.constant 0 : index
    %29 = vector.load %arg6[%c0_16, %c0_17, %c0_18] : memref<1x8x8xf32, #tpu.memory_space<vmem>>, vector<1x8x8xf32>
    %30 = vector.shape_cast %29 : vector<1x8x8xf32> to vector<8x8xf32>
    %31 = vector.shape_cast %28 : vector<8x8xf32> to vector<1x8x8xf32>
    tpu.vector_store %arg6[%c0_16, %c0_17, %c0_18], %31 {strides = array<i32>} : memref<1x8x8xf32, #tpu.memory_space<vmem>>, vector<1x8x8xf32>,
    %cst_19 = arith.constant dense<0.000000e+00> : vector<8x128xf32>
    %32 = tpu.matmul %28, %9, %cst_19 {dimension_numbers = #tpu.dot_dimension_numbers<[1], [0], [0], [1], [0, 0, 1, 1], [], []>} : vector<8x8xf32>, vector<8x128xf32>, vector<8x128xf32> -> vector<8x128xf32>
    %c0_20 = arith.constant 0 : index
    %c0_21 = arith.constant 0 : index
    %c0_22 = arith.constant 0 : index
    %33 = vector.load %arg5[%c0_20, %c0_21, %c0_22] : memref<1x8x128xf32, #tpu.memory_space<vmem>>, vector<1x8x128xf32>
    %34 = vector.shape_cast %33 : vector<1x8x128xf32> to vector<8x128xf32>
    %35 = vector.shape_cast %32 : vector<8x128xf32> to vector<1x8x128xf32>
    tpu.vector_store %arg5[%c0_20, %c0_21, %c0_22], %35 {strides = array<i32>} : memref<1x8x128xf32, #tpu.memory_space<vmem>>, vector<1x8x128xf32>,
    return
  }
  func.func @transform_0(%arg0: i32) -> (i32, i32, i32) {
    %c0_i32 = arith.constant 0 : i32
    %c0_i32_0 = arith.constant 0 : i32
    %c0_i32_1 = arith.constant 0 : i32
    return %arg0, %c0_i32, %c0_i32_0 : i32, i32, i32
  }
  func.func @transform_1(%arg0: i32) -> (i32, i32, i32) {
    %c0_i32 = arith.constant 0 : i32
    %c0_i32_0 = arith.constant 0 : i32
    %c0_i32_1 = arith.constant 0 : i32
    return %arg0, %c0_i32, %c0_i32_0 : i32, i32, i32
  }
  func.func @transform_2(%arg0: i32) -> (i32, i32) {
    %c0_i32 = arith.constant 0 : i32
    %c0_i32_0 = arith.constant 0 : i32
    %c0_i32_1 = arith.constant 0 : i32
    return %c0_i32, %c0_i32_0 : i32, i32
  }
  func.func @transform_3(%arg0: i32) -> (i32, i32) {
    %c0_i32 = arith.constant 0 : i32
    %c0_i32_0 = arith.constant 0 : i32
    %c0_i32_1 = arith.constant 0 : i32
    return %c0_i32, %c0_i32_0 : i32, i32
  }
  func.func @transform_4(%arg0: i32) -> (i32, i32, i32) {
    %c0_i32 = arith.constant 0 : i32
    %c0_i32_0 = arith.constant 0 : i32
    %c0_i32_1 = arith.constant 0 : i32
    return %arg0, %c0_i32, %c0_i32_0 : i32, i32, i32
  }
  func.func @transform_5(%arg0: i32) -> (i32, i32, i32) {
    %c0_i32 = arith.constant 0 : i32
    %c0_i32_0 = arith.constant 0 : i32
    %c0_i32_1 = arith.constant 0 : i32
    return %arg0, %c0_i32, %c0_i32_0 : i32, i32, i32
  }
  func.func @transform_6(%arg0: i32) -> (i32, i32, i32) {
    %c0_i32 = arith.constant 0 : i32
    %c0_i32_0 = arith.constant 0 : i32
    %c0_i32_1 = arith.constant 0 : i32
    return %arg0, %c0_i32, %c0_i32_0 : i32, i32, i32
  }
}

</mosaic_0001>

<llo_original>
// kernel: mixed_self_attention.1
$region0: #{mixed_self_attention.1}
  #allocation0 [shape = 'u32[]', space=smem, size = 0x4, offset = 0x4, fixed_abs, tag = 'smem constant byte address 0x4 - core index']
  #allocation1 [shape = 'u32[144,128]{1,0:T(1,128)}', space=vmem, size = 0x12000, scoped, tag = 'internal scratch']
  %s0 = inlined_call_operand.vmem [shape: f32[8,8,128], index: 0, kind: input, shape index: {}]
  %s1 = inlined_call_operand.vmem [shape: f32[8,8,8], index: 1, kind: input, shape index: {}]
  %s2 = inlined_call_operand.hbm [shape: f32[128,384], index: 2, kind: input, shape index: {}]
  %s3 = inlined_call_operand.vmem [shape: f32[1,384], index: 3, kind: input, shape index: {}]
  %s4 = inlined_call_operand.hbm [shape: f32[8,8,128], index: 4, kind: output, shape index: {0}]
  %s5 = inlined_call_operand.hbm [shape: f32[8,8,8], index: 5, kind: output, shape index: {1}]
  %s6 = inlined_call_operand.hbm [shape: f32[8,8,8], index: 6, kind: output, shape index: {2}]
  %7 = xla_tuple %s4, %s5, %s6
  %s8 = sld [smem:[#allocation0]]
  $region69: #{mixed_self_attention.1} parent=0
    _
  %s10 = ssub.s32 1, %s8
  %s11 = scalar_select 0, %s10, %s8
  $region1: #{mixed_self_attention.1} parent=0
    #allocation2 [shape = 'u8[196608]{0}', space=vmem, size = 0x30000, scoped, tag = 'input window, operand 2, single buffered']
    #allocation3 [shape = 's32[2]{0}', space=sflag, size = 0x8, scoped, tag = 'scoped memory for mixed_self_attention.1']
    #allocation4 [shape = 's32[2]{0}', space=sflag, size = 0x8, scoped, tag = 'scoped memory for mixed_self_attention.1']
    #allocation5 [shape = 'u8[8192]{0}', space=vmem, size = 0x2000, scoped, tag = 'output window, operand 0']
    #allocation6 [shape = 'u8[8192]{0}', space=vmem, size = 0x2000, scoped, tag = 'output window, operand 1']
    #allocation7 [shape = 's32[2]{0}', space=sflag, size = 0x8, scoped, tag = 'scoped memory for mixed_self_attention.1']
    #allocation8 [shape = 'u8[8192]{0}', space=vmem, size = 0x2000, scoped, tag = 'output window, operand 2']
    %12 = vsyncpa [#allocation3], 0
    %13 = vsyncpa [#allocation4], 0
    %s14 = scalar_lea.sflag [#allocation4], 1
    %15 = vsyncpa %s14, 0
    %16 = vsyncpa [#allocation7], 0
    %s17 = scalar_lea.sflag [#allocation7], 1
    %18 = vsyncpa %s17, 0
    loop: start=0, step=1, limit=10
    $region2: #{mixed_self_attention.1} parent=1 // loop_pre_header
      _
    $region3: #{mixed_self_attention.1} parent=1 // loop_header
      %s20 = sphi 0, %s24
      %p21 = scmp.ge.s32.totalorder %s20, 10
      %s30 = sphi 0, %s32
      %s33 = sphi 0, %s30
      %s34 = sphi 0, %s33
      %s50 = sphi 0, %s34
      %s56 = sphi 0, %s58
      %s59 = sphi 0, %s56
      %s60 = sphi 0, %s59
      %s76 = sphi 0, %s60
      %s80 = sphi 0, %s80
      %s82 = sphi 0, %s80
      %s83 = sphi 0, %s82
      %s97 = sphi 0, %s83
      %s101 = sphi 0, %s101
      %s103 = sphi 0, %s101
      %s104 = sphi 0, %s103
      %s118 = sphi 0, %s104
      %s124 = sphi 0, %s126
      %s127 = sphi 0, %s124
      %s128 = sphi 0, %s127
      %s144 = sphi 0, %s128
      %s150 = sphi 0, %s152
      %s153 = sphi 0, %s150
      %s154 = sphi 0, %s153
      %s170 = sphi 0, %s154
      %s176 = sphi 0, %s178
      %s179 = sphi 0, %s176
      %s180 = sphi 0, %s179
      %s196 = sphi 0, %s180
    $region4: #{mixed_self_attention.1} parent=1 // loop_header_branch
      %23 = sbr.rel (%p21) target = $region8
    $region5: #{mixed_self_attention.1} parent=1 // loop_body
      %s25 = ssub.s32 %s20, 1
      %s26 = ssub.s32 %s20, 2
      %s27 = sadd.s32 %s20, 1
      %s28 = ssub.s32 %s20, %s27
      %p29 = scmp.eq.s32.totalorder %s28, 0
      %s31 = sadd.s32 %s30, 1
      %s32 = scalar_select %p29, %s30, %s31
      %p35 = pneg %p29
      %p36 = scmp.eq.s32.totalorder %s20, 7
      %p37 = por %p35, %p36
      %p38 = scmp.ne.s32.totalorder %s30, %s33
      %p39 = scmp.eq.s32.totalorder %s20, 0
      %p40 = por %p38, %p39
      %p41 = scmp.ne.s32.totalorder %s30, %s33
      %p42 = scmp.eq.s32.totalorder %s25, 7
      %p43 = por %p41, %p42
      %p44 = scmp.ne.s32.totalorder %s33, %s34
      %p45 = scmp.eq.s32.totalorder %s25, 0
      %p46 = por %p44, %p45
      %p47 = scmp.ne.s32.totalorder %s33, %s34
      %p48 = scmp.eq.s32.totalorder %s26, 7
      %p49 = por %p47, %p48
      %p51 = scmp.ne.s32.totalorder %s34, %s50
      %p52 = scmp.eq.s32.totalorder %s26, 0
      %p53 = por %p51, %p52
      %s54 = ssub.s32 %s20, %s27
      %p55 = scmp.eq.s32.totalorder %s54, 0
      %s57 = sadd.s32 %s56, 1
      %s58 = scalar_select %p55, %s56, %s57
      %p61 = pneg %p55
      %p62 = scmp.eq.s32.totalorder %s20, 7
      %p63 = por %p61, %p62
      %p64 = scmp.ne.s32.totalorder %s56, %s59
      %p65 = scmp.eq.s32.totalorder %s20, 0
      %p66 = por %p64, %p65
      %p67 = scmp.ne.s32.totalorder %s56, %s59
      %p68 = scmp.eq.s32.totalorder %s25, 7
      %p69 = por %p67, %p68
      %p70 = scmp.ne.s32.totalorder %s59, %s60
      %p71 = scmp.eq.s32.totalorder %s25, 0
      %p72 = por %p70, %p71
      %p73 = scmp.ne.s32.totalorder %s59, %s60
      %p74 = scmp.eq.s32.totalorder %s26, 7
      %p75 = por %p73, %p74
      %p77 = scmp.ne.s32.totalorder %s60, %s76
      %p78 = scmp.eq.s32.totalorder %s26, 0
      %p79 = por %p77, %p78
      %s81 = sadd.s32 %s80, 1
      %p84 = scmp.eq.s32.totalorder %s20, 7
      %p85 = scmp.ne.s32.totalorder %s80, %s82
      %p86 = scmp.eq.s32.totalorder %s20, 0
      %p87 = por %p85, %p86
      %p88 = scmp.ne.s32.totalorder %s80, %s82
      %p89 = scmp.eq.s32.totalorder %s25, 7
      %p90 = por %p88, %p89
      %p91 = scmp.ne.s32.totalorder %s82, %s83
      %p92 = scmp.eq.s32.totalorder %s25, 0
      %p93 = por %p91, %p92
      %p94 = scmp.ne.s32.totalorder %s82, %s83
      %p95 = scmp.eq.s32.totalorder %s26, 7
      %p96 = por %p94, %p95
      %p98 = scmp.ne.s32.totalorder %s83, %s97
      %p99 = scmp.eq.s32.totalorder %s26, 0
      %p100 = por %p98, %p99
      %s102 = sadd.s32 %s101, 1
      %p105 = scmp.eq.s32.totalorder %s20, 7
      %p106 = scmp.ne.s32.totalorder %s101, %s103
      %p107 = scmp.eq.s32.totalorder %s20, 0
      %p108 = por %p106, %p107
      %p109 = scmp.ne.s32.totalorder %s101, %s103
      %p110 = scmp.eq.s32.totalorder %s25, 7
      %p111 = por %p109, %p110
      %p112 = scmp.ne.s32.totalorder %s103, %s104
      %p113 = scmp.eq.s32.totalorder %s25, 0
      %p114 = por %p112, %p113
      %p115 = scmp.ne.s32.totalorder %s103, %s104
      %p116 = scmp.eq.s32.totalorder %s26, 7
      %p117 = por %p115, %p116
      %p119 = scmp.ne.s32.totalorder %s104, %s118
      %p120 = scmp.eq.s32.totalorder %s26, 0
      %p121 = por %p119, %p120
      %s122 = ssub.s32 %s20, %s27
      %p123 = scmp.eq.s32.totalorder %s122, 0
      %s125 = sadd.s32 %s124, 1
      %s126 = scalar_select %p123, %s124, %s125
      %p129 = pneg %p123
      %p130 = scmp.eq.s32.totalorder %s20, 7
      %p131 = por %p129, %p130
      %p132 = scmp.ne.s32.totalorder %s124, %s127
      %p133 = scmp.eq.s32.totalorder %s20, 0
      %p134 = por %p132, %p133
      %p135 = scmp.ne.s32.totalorder %s124, %s127
      %p136 = scmp.eq.s32.totalorder %s25, 7
      %p137 = por %p135, %p136
      %p138 = scmp.ne.s32.totalorder %s127, %s128
      %p139 = scmp.eq.s32.totalorder %s25, 0
      %p140 = por %p138, %p139
      %p141 = scmp.ne.s32.totalorder %s127, %s128
      %p142 = scmp.eq.s32.totalorder %s26, 7
      %p143 = por %p141, %p142
      %p145 = scmp.ne.s32.totalorder %s128, %s144
      %p146 = scmp.eq.s32.totalorder %s26, 0
      %p147 = por %p145, %p146
      %s148 = ssub.s32 %s20, %s27
      %p149 = scmp.eq.s32.totalorder %s148, 0
      %s151 = sadd.s32 %s150, 1
      %s152 = scalar_select %p149, %s150, %s151
      %p155 = pneg %p149
      %p156 = scmp.eq.s32.totalorder %s20, 7
      %p157 = por %p155, %p156
      %p158 = scmp.ne.s32.totalorder %s150, %s153
      %p159 = scmp.eq.s32.totalorder %s20, 0
      %p160 = por %p158, %p159
      %p161 = scmp.ne.s32.totalorder %s150, %s153
      %p162 = scmp.eq.s32.totalorder %s25, 7
      %p163 = por %p161, %p162
      %p164 = scmp.ne.s32.totalorder %s153, %s154
      %p165 = scmp.eq.s32.totalorder %s25, 0
      %p166 = por %p164, %p165
      %p167 = scmp.ne.s32.totalorder %s153, %s154
      %p168 = scmp.eq.s32.totalorder %s26, 7
      %p169 = por %p167, %p168
      %p171 = scmp.ne.s32.totalorder %s154, %s170
      %p172 = scmp.eq.s32.totalorder %s26, 0
      %p173 = por %p171, %p172
      %s174 = ssub.s32 %s20, %s27
      %p175 = scmp.eq.s32.totalorder %s174, 0
      %s177 = sadd.s32 %s176, 1
      %s178 = scalar_select %p175, %s176, %s177
      %p181 = pneg %p175
      %p182 = scmp.eq.s32.totalorder %s20, 7
      %p183 = por %p181, %p182
      %p184 = scmp.ne.s32.totalorder %s176, %s179
      %p185 = scmp.eq.s32.totalorder %s20, 0
      %p186 = por %p184, %p185
      %p187 = scmp.ne.s32.totalorder %s176, %s179
      %p188 = scmp.eq.s32.totalorder %s25, 7
      %p189 = por %p187, %p188
      %p190 = scmp.ne.s32.totalorder %s179, %s180
      %p191 = scmp.eq.s32.totalorder %s25, 0
      %p192 = por %p190, %p191
      %p193 = scmp.ne.s32.totalorder %s179, %s180
      %p194 = scmp.eq.s32.totalorder %s26, 7
      %p195 = por %p193, %p194
      %p197 = scmp.ne.s32.totalorder %s180, %s196
      %p198 = scmp.eq.s32.totalorder %s26, 0
      %p199 = por %p197, %p198
      %p200 = scmp.le.s32.totalorder 1, %s20
      %p201 = scmp.lt.s32.totalorder %s20, 9
      %p202 = pnand %p200, %p201
      %p203 = pneg %p202
      // Predicated region
      $region9: #{mixed_self_attention.1} parent=5 // pred_check
        _
      $region10: #{mixed_self_attention.1} parent=5 // pred_check_branch
        %205 = sbr.rel (%p202) target = $region12
      $region11: #{mixed_self_attention.1} parent=5 // pred_region
        %s206 = ssub.s32 %s20, 1
        // Predicated region
        $region13: #{mixed_self_attention.1} parent=11 // pred_check
          %p207 = pneg %p93
        $region14: #{mixed_self_attention.1} parent=11 // pred_check_branch
          %209 = sbr.rel (%p207) target = $region16
        $region15: #{mixed_self_attention.1} parent=11 // pred_region
          %s211 = ssub.s32 6144, 6144
          %212 = vsyncadd [#allocation3], %s211
          %s213 = sshll.u32 [#allocation2], 4
          %s214 = int_to_ptr.vmem [resolvable:$true] %s213
          %219 = dma.hbm_to_vmem [thread:$0]  %s2, 6144, %s214, [#allocation3], 384, 384, 24
        $region16: #{mixed_self_attention.1} parent=11 // pred_fallthru
          _
        // Predicated region
        $region17: #{mixed_self_attention.1} parent=11 // pred_check
          %p220 = pneg %p114
        $region18: #{mixed_self_attention.1} parent=11 // pred_check_branch
          %222 = sbr.rel (%p220) target = $region20
        $region19: #{mixed_self_attention.1} parent=11 // pred_region
          _
        $region20: #{mixed_self_attention.1} parent=11 // pred_fallthru
          _
      $region12: #{mixed_self_attention.1} parent=5 // pred_fallthru
        _
      %p223 = scmp.lt.s32.totalorder %s20, 8
      // Predicated region
      $region21: #{mixed_self_attention.1} parent=5 // pred_check
        %p224 = pneg %p223
      $region22: #{mixed_self_attention.1} parent=5 // pred_check_branch
        %226 = sbr.rel (%p224) target = $region24
      $region23: #{mixed_self_attention.1} parent=5 // pred_region
        // Predicated region
        $region25: #{mixed_self_attention.1} parent=23 // pred_check
          %p227 = pneg %p40
        $region26: #{mixed_self_attention.1} parent=23 // pred_check_branch
          %229 = sbr.rel (%p227) target = $region28
        $region27: #{mixed_self_attention.1} parent=23 // pred_region
          %p230 = scmp.lt.s32.totalorder %s20, 7
          %s231 = scalar_select %p230, %s20, 7
          %s232 = smul.addr %s231, 8
          %s233 = scalar_lea.vmem %s0, %s232
        $region28: #{mixed_self_attention.1} parent=23 // pred_fallthru
          _
        // Predicated region
        $region29: #{mixed_self_attention.1} parent=23 // pred_check
          %p234 = pneg %p66
        $region30: #{mixed_self_attention.1} parent=23 // pred_check_branch
          %236 = sbr.rel (%p234) target = $region32
        $region31: #{mixed_self_attention.1} parent=23 // pred_region
          %p237 = scmp.lt.s32.totalorder %s20, 7
          %s238 = scalar_select %p237, %s20, 7
          %s239 = smul.addr %s238, 8
          %s240 = scalar_lea.vmem %s1, %s239
        $region32: #{mixed_self_attention.1} parent=23 // pred_fallthru
          _
      $region24: #{mixed_self_attention.1} parent=5 // pred_fallthru
        _
      %p241 = scmp.le.s32.totalorder 1, %s20
      %p242 = scmp.lt.s32.totalorder %s20, 9
      %p243 = pnand %p241, %p242
      %p244 = pneg %p243
      // Predicated region
      $region33: #{mixed_self_attention.1} parent=5 // pred_check
        _
      $region34: #{mixed_self_attention.1} parent=5 // pred_check_branch
        %246 = sbr.rel (%p243) target = $region36
      $region35: #{mixed_self_attention.1} parent=5 // pred_region
        %s247 = ssub.s32 %s20, 1
        // Predicated region
        $region37: #{mixed_self_attention.1} parent=35 // pred_check
          %p248 = pneg %p93
        $region38: #{mixed_self_attention.1} parent=35 // pred_check_branch
          %250 = sbr.rel (%p248) target = $region40
        $region39: #{mixed_self_attention.1} parent=35 // pred_region
          %251 = dma.done [#allocation3], 6144
        $region40: #{mixed_self_attention.1} parent=35 // pred_fallthru
          _
        %p252 = scmp.lt.s32.totalorder %s25, 7
        %s253 = scalar_select %p252, %s25, 7
        %s254 = smul.addr %s253, 8
        %s255 = scalar_lea.vmem %s0, %s254
        %p256 = pneg %p46
        %p257 = pneg %p43
        %p258 = scmp.lt.s32.totalorder %s25, 7
        %s259 = scalar_select %p258, %s25, 7
        %s260 = smul.addr %s259, 8
        %s261 = scalar_lea.vmem %s1, %s260
        %p262 = pneg %p72
        %p263 = pneg %p69
        %p264 = pneg %p93
        %p265 = pneg %p90
        %p266 = pneg %p114
        %p267 = pneg %p111
        %p268 = pneg %p140
        %p269 = pneg %p137
        %s270 = sand.u32 %s127, 1
        %s271 = scalar_lea.sflag [#allocation4], %s270
        %s272 = sand.u32 %s127, 1
        %s273 = smul.addr %s272, 8
        %s274 = scalar_lea.vmem [#allocation5], %s273
        %p275 = pneg %p166
        %p276 = pneg %p163
        %s277 = sand.u32 %s25, 1
        %s278 = scalar_lea.sflag [#allocation7], %s277
        %s279 = sand.u32 %s153, 1
        %s280 = smul.addr %s279, 8
        %s281 = scalar_lea.vmem [#allocation6], %s280
        %p282 = pneg %p192
        %p283 = pneg %p189
        %s284 = sand.u32 %s25, 1
        %s285 = scalar_lea.sflag [#allocation7], %s284
        %s286 = sand.u32 %s179, 1
        %s287 = smul.addr %s286, 8
        %s288 = scalar_lea.vmem [#allocation8], %s287
        %p289 = scmp.lt.s32.totalorder %s25, 7
        %s290 = scalar_select %p289, %s25, 7
        %s291 = smul.addr %s290, 8
        %s292 = scalar_lea.vmem %s0, %s291
        %p293 = scmp.lt.s32.totalorder %s25, 7
        %s294 = scalar_select %p293, %s25, 7
        %s295 = smul.addr %s294, 8
        %s296 = scalar_lea.vmem %s1, %s295
        %v297 = vld [vmem:[%s292] sm:$0xff]
        %v298 = vld [vmem:[#allocation2] sm:$0xff]
        %v299 = vld [vmem:[#allocation2 + $0x8] sm:$0xff]
        %v300 = vld [vmem:[#allocation2 + $0x10] sm:$0xff]
        %v301 = vld [vmem:[#allocation2 + $0x18] sm:$0xff]
        %v302 = vld [vmem:[#allocation2 + $0x20] sm:$0xff]
        %v303 = vld [vmem:[#allocation2 + $0x28] sm:$0xff]
        %v304 = vld [vmem:[#allocation2 + $0x30] sm:$0xff]
        %v305 = vld [vmem:[#allocation2 + $0x38] sm:$0xff]
        %v306 = vld [vmem:[#allocation2 + $0x40] sm:$0xff]
        %v307 = vld [vmem:[#allocation2 + $0x48] sm:$0xff]
        %v308 = vld [vmem:[#allocation2 + $0x50] sm:$0xff]
        %v309 = vld [vmem:[#allocation2 + $0x58] sm:$0xff]
        %v310 = vld [vmem:[#allocation2 + $0x60] sm:$0xff]
        %v311 = vld [vmem:[#allocation2 + $0x68] sm:$0xff]
        %v312 = vld [vmem:[#allocation2 + $0x70] sm:$0xff]
        %v313 = vld [vmem:[#allocation2 + $0x78] sm:$0xff]
        %v314 = vld [vmem:[#allocation2 + $0x80] sm:$0xff]
        %v315 = vld [vmem:[#allocation2 + $0x88] sm:$0xff]
        %v316 = vld [vmem:[#allocation2 + $0x90] sm:$0xff]
        %v317 = vld [vmem:[#allocation2 + $0x98] sm:$0xff]
        %v318 = vld [vmem:[#allocation2 + $0xa0] sm:$0xff]
        %v319 = vld [vmem:[#allocation2 + $0xa8] sm:$0xff]
        %v320 = vld [vmem:[#allocation2 + $0xb0] sm:$0xff]
        %v321 = vld [vmem:[#allocation2 + $0xb8] sm:$0xff]
        %v322 = vld [vmem:[#allocation2 + $0xc0] sm:$0xff]
        %v323 = vld [vmem:[#allocation2 + $0xc8] sm:$0xff]
        %v324 = vld [vmem:[#allocation2 + $0xd0] sm:$0xff]
        %v325 = vld [vmem:[#allocation2 + $0xd8] sm:$0xff]
        %v326 = vld [vmem:[#allocation2 + $0xe0] sm:$0xff]
        %v327 = vld [vmem:[#allocation2 + $0xe8] sm:$0xff]
        %v328 = vld [vmem:[#allocation2 + $0xf0] sm:$0xff]
        %v329 = vld [vmem:[#allocation2 + $0xf8] sm:$0xff]
        %v330 = vld [vmem:[#allocation2 + $0x100] sm:$0xff]
        %v331 = vld [vmem:[#allocation2 + $0x108] sm:$0xff]
        %v332 = vld [vmem:[#allocation2 + $0x110] sm:$0xff]
        %v333 = vld [vmem:[#allocation2 + $0x118] sm:$0xff]
        %v334 = vld [vmem:[#allocation2 + $0x120] sm:$0xff]
        %v335 = vld [vmem:[#allocation2 + $0x128] sm:$0xff]
        %v336 = vld [vmem:[#allocation2 + $0x130] sm:$0xff]
        %v337 = vld [vmem:[#allocation2 + $0x138] sm:$0xff]
        %v338 = vld [vmem:[#allocation2 + $0x140] sm:$0xff]
        %v339 = vld [vmem:[#allocation2 + $0x148] sm:$0xff]
        %v340 = vld [vmem:[#allocation2 + $0x150] sm:$0xff]
        %v341 = vld [vmem:[#allocation2 + $0x158] sm:$0xff]
        %v342 = vld [vmem:[#allocation2 + $0x160] sm:$0xff]
        %v343 = vld [vmem:[#allocation2 + $0x168] sm:$0xff]
        %v344 = vld [vmem:[#allocation2 + $0x170] sm:$0xff]
        %v345 = vld [vmem:[#allocation2 + $0x178] sm:$0xff]
        %v346 = vld [vmem:[%s3] sm:$0x7]
        %v348 = vlaneseq
        %v349 = vshrl.u32 %v348, 7
        %v350 = vsub.s32 0, %v349
        %v351 = vrot.slane %v346, %v350
        %v352 = vlaneseq
        %v353 = vshrl.u32 %v352, 7
        %v354 = vsub.s32 1, %v353
        %v355 = vrot.slane %v346, %v354
        %v356 = vlaneseq
        %v357 = vshrl.u32 %v356, 7
        %v358 = vsub.s32 2, %v357
        %v359 = vrot.slane %v346, %v358
        %363 = vmatprep.subr.mxu0 %v344
        %364 = vmatpush1.msra.mxu0 %v343
        %365 = vmatprep.subr.mxu0 %v341
        %366 = vmatpush1.msra.mxu0 %v340
        %367 = vmatprep.subr.mxu0 %v338
        %368 = vmatpush1.msra.mxu0 %v337
        %369 = vmatprep.subr.mxu0 %v335
        %370 = vmatpush1.msra.mxu0 %v334
        %371 = vmatprep.subr.mxu0 %v332
        %372 = vmatpush1.msra.mxu0 %v331
        %373 = vmatprep.subr.mxu0 %v329
        %374 = vmatpush1.msra.mxu0 %v328
        %375 = vmatprep.subr.mxu0 %v326
        %376 = vmatpush1.msra.mxu0 %v325
        %377 = vmatprep.subr.mxu0 %v323
        %378 = vmatpush1.msra.mxu0 %v322
        %379 = vmatprep.subr.mxu0 %v320
        %380 = vmatpush1.msra.mxu0 %v319
        %381 = vmatprep.subr.mxu0 %v317
        %382 = vmatpush1.msra.mxu0 %v316
        %383 = vmatprep.subr.mxu0 %v314
        %384 = vmatpush1.msra.mxu0 %v313
        %385 = vmatprep.subr.mxu0 %v311
        %386 = vmatpush1.msra.mxu0 %v310
        %387 = vmatprep.subr.mxu0 %v308
        %388 = vmatpush1.msra.mxu0 %v307
        %389 = vmatprep.subr.mxu0 %v305
        %390 = vmatpush1.msra.mxu0 %v304
        %391 = vmatprep.subr.mxu0 %v302
        %392 = vmatpush1.msra.mxu0 %v301
        %393 = vmatprep.subr.mxu0 %v299
        %394 = vmatpush1.msra.mxu0 %v298
        %395 = vmatprep.subr.mxu0 0.0
        %396 = vmatpush2.msra.mxu0 0.0
        %397 = vmatprep.subr.mxu0 0.0
        %398 = vmatpush2.msra.mxu0 0.0
        %399 = vmatprep.subr.mxu0 0.0
        %400 = vmatpush2.msra.mxu0 0.0
        %401 = vmatprep.subr.mxu0 0.0
        %402 = vmatpush2.msra.mxu0 0.0
        %403 = vmatprep.subr.mxu0 0.0
        %404 = vmatpush2.msra.mxu0 0.0
        %405 = vmatprep.subr.mxu0 0.0
        %406 = vmatpush2.msra.mxu0 0.0
        %407 = vmatprep.subr.mxu0 0.0
        %408 = vmatpush2.msra.mxu0 0.0
        %409 = vmatprep.subr.mxu0 0.0
        %410 = vmatpush2.msra.mxu0 0.0
        %411 = vmatprep.subr.mxu0 0.0
        %412 = vmatpush2.msra.mxu0 0.0
        %413 = vmatprep.subr.mxu0 0.0
        %414 = vmatpush2.msra.mxu0 0.0
        %415 = vmatprep.subr.mxu0 0.0
        %416 = vmatpush2.msra.mxu0 0.0
        %417 = vmatprep.subr.mxu0 0.0
        %418 = vmatpush2.msra.mxu0 0.0
        %419 = vmatprep.subr.mxu0 0.0
        %420 = vmatpush2.msra.mxu0 0.0
        %421 = vmatprep.subr.mxu0 0.0
        %422 = vmatpush2.msra.mxu0 0.0
        %423 = vmatprep.subr.mxu0 0.0
        %424 = vmatpush2.msra.mxu0 0.0
        %425 = vmatprep.subr.mxu0 0.0
        %426 = vmatpush2.msra.mxu0 0.0
        %427 = vmatprep.mubr.f32.mxu0 0.0
        %428 = vmatmul.mubr.f32.gmra.mxu0 %v297
        %v429 = vpop.f32.mrf.mxu0
        %v430 = vadd.f32 %v351, %v429
        %v431 = vpop.f32.mrf.mxu0
        %v432 = vadd.f32 %v355, %v431
        %433 = vdwg.mxu0
        %434 = vmatprep.subr.mxu0 0.0
        %435 = vmatpush1.msra.mxu0 %v345
        %436 = vmatprep.subr.mxu0 0.0
        %437 = vmatpush1.msra.mxu0 %v342
        %438 = vmatprep.subr.mxu0 0.0
        %439 = vmatpush1.msra.mxu0 %v339
        %440 = vmatprep.subr.mxu0 0.0
        %441 = vmatpush1.msra.mxu0 %v336
        %442 = vmatprep.subr.mxu0 0.0
        %443 = vmatpush1.msra.mxu0 %v333
        %444 = vmatprep.subr.mxu0 0.0
        %445 = vmatpush1.msra.mxu0 %v330
        %446 = vmatprep.subr.mxu0 0.0
        %447 = vmatpush1.msra.mxu0 %v327
        %448 = vmatprep.subr.mxu0 0.0
        %449 = vmatpush1.msra.mxu0 %v324
        %450 = vmatprep.subr.mxu0 0.0
        %451 = vmatpush1.msra.mxu0 %v321
        %452 = vmatprep.subr.mxu0 0.0
        %453 = vmatpush1.msra.mxu0 %v318
        %454 = vmatprep.subr.mxu0 0.0
        %455 = vmatpush1.msra.mxu0 %v315
        %456 = vmatprep.subr.mxu0 0.0
        %457 = vmatpush1.msra.mxu0 %v312
        %458 = vmatprep.subr.mxu0 0.0
        %459 = vmatpush1.msra.mxu0 %v309
        %460 = vmatprep.subr.mxu0 0.0
        %461 = vmatpush1.msra.mxu0 %v306
        %462 = vmatprep.subr.mxu0 0.0
        %463 = vmatpush1.msra.mxu0 %v303
        %464 = vmatprep.subr.mxu0 0.0
        %465 = vmatpush1.msra.mxu0 %v300
        %466 = vmatprep.subr.mxu0 0.0
        %467 = vmatpush2.msra.mxu0 0.0
        %468 = vmatprep.subr.mxu0 0.0
        %469 = vmatpush2.msra.mxu0 0.0
        %470 = vmatprep.subr.mxu0 0.0
        %471 = vmatpush2.msra.mxu0 0.0
        %472 = vmatprep.subr.mxu0 0.0
        %473 = vmatpush2.msra.mxu0 0.0
        %474 = vmatprep.subr.mxu0 0.0
        %475 = vmatpush2.msra.mxu0 0.0
        %476 = vmatprep.subr.mxu0 0.0
        %477 = vmatpush2.msra.mxu0 0.0
        %478 = vmatprep.subr.mxu0 0.0
        %479 = vmatpush2.msra.mxu0 0.0
        %480 = vmatprep.subr.mxu0 0.0
        %481 = vmatpush2.msra.mxu0 0.0
        %482 = vmatprep.subr.mxu0 0.0
        %483 = vmatpush2.msra.mxu0 0.0
        %484 = vmatprep.subr.mxu0 0.0
        %485 = vmatpush2.msra.mxu0 0.0
        %486 = vmatprep.subr.mxu0 0.0
        %487 = vmatpush2.msra.mxu0 0.0
        %488 = vmatprep.subr.mxu0 0.0
        %489 = vmatpush2.msra.mxu0 0.0
        %490 = vmatprep.subr.mxu0 0.0
        %491 = vmatpush2.msra.mxu0 0.0
        %492 = vmatprep.subr.mxu0 0.0
        %493 = vmatpush2.msra.mxu0 0.0
        %494 = vmatprep.subr.mxu0 0.0
        %495 = vmatpush2.msra.mxu0 0.0
        %496 = vmatprep.subr.mxu0 0.0
        %497 = vmatpush2.msra.mxu0 0.0
        %498 = vmatprep.mubr.f32.mxu0 0.0
        %499 = vmatmul.mubr.f32.gmra.mxu0 %v297
        %v500 = vpop.f32.mrf.mxu0
        %v501 = vadd.f32 %v359, %v500
        %v502 = vpop.f32.mrf.mxu0
        %503 = vdwg.mxu0
        %504 = vmatprep.subr.mxu0 0.0
        %505 = vmatpush1.xpose.msra.mxu0 0.0
        %506 = vmatprep.subr.mxu0 0.0
        %507 = vmatpush1.xpose.msra.mxu0 0.0
        %508 = vmatprep.subr.mxu0 0.0
        %509 = vmatpush1.xpose.msra.mxu0 0.0
        %510 = vmatprep.subr.mxu0 0.0
        %511 = vmatpush1.xpose.msra.mxu0 0.0
        %512 = vmatprep.subr.mxu0 0.0
        %513 = vmatpush1.xpose.msra.mxu0 0.0
        %514 = vmatprep.subr.mxu0 0.0
        %515 = vmatpush1.xpose.msra.mxu0 0.0
        %516 = vmatprep.subr.mxu0 0.0
        %517 = vmatpush1.xpose.msra.mxu0 0.0
        %518 = vmatprep.subr.mxu0 0.0
        %519 = vmatpush1.xpose.msra.mxu0 0.0
        %520 = vmatprep.subr.mxu0 0.0
        %521 = vmatpush1.xpose.msra.mxu0 0.0
        %522 = vmatprep.subr.mxu0 0.0
        %523 = vmatpush1.xpose.msra.mxu0 0.0
        %524 = vmatprep.subr.mxu0 0.0
        %525 = vmatpush1.xpose.msra.mxu0 0.0
        %526 = vmatprep.subr.mxu0 0.0
        %527 = vmatpush1.xpose.msra.mxu0 0.0
        %528 = vmatprep.subr.mxu0 0.0
        %529 = vmatpush1.xpose.msra.mxu0 0.0
        %530 = vmatprep.subr.mxu0 0.0
        %531 = vmatpush1.xpose.msra.mxu0 0.0
        %532 = vmatprep.subr.mxu0 0.0
        %533 = vmatpush1.xpose.msra.mxu0 0.0
        %534 = vmatprep.subr.mxu0 0.0
        %535 = vmatpush1.xpose.msra.mxu0 %v432
        %536 = vmatprep.subr.mxu0 0.0
        %537 = vmatpush2.xpose.msra.mxu0 0.0
        %538 = vmatprep.subr.mxu0 0.0
        %539 = vmatpush2.xpose.msra.mxu0 0.0
        %540 = vmatprep.subr.mxu0 0.0
        %541 = vmatpush2.xpose.msra.mxu0 0.0
        %542 = vmatprep.subr.mxu0 0.0
        %543 = vmatpush2.xpose.msra.mxu0 0.0
        %544 = vmatprep.subr.mxu0 0.0
        %545 = vmatpush2.xpose.msra.mxu0 0.0
        %546 = vmatprep.subr.mxu0 0.0
        %547 = vmatpush2.xpose.msra.mxu0 0.0
        %548 = vmatprep.subr.mxu0 0.0
        %549 = vmatpush2.xpose.msra.mxu0 0.0
        %550 = vmatprep.subr.mxu0 0.0
        %551 = vmatpush2.xpose.msra.mxu0 0.0
        %552 = vmatprep.subr.mxu0 0.0
        %553 = vmatpush2.xpose.msra.mxu0 0.0
        %554 = vmatprep.subr.mxu0 0.0
        %555 = vmatpush2.xpose.msra.mxu0 0.0
        %556 = vmatprep.subr.mxu0 0.0
        %557 = vmatpush2.xpose.msra.mxu0 0.0
        %558 = vmatprep.subr.mxu0 0.0
        %559 = vmatpush2.xpose.msra.mxu0 0.0
        %560 = vmatprep.subr.mxu0 0.0
        %561 = vmatpush2.xpose.msra.mxu0 0.0
        %562 = vmatprep.subr.mxu0 0.0
        %563 = vmatpush2.xpose.msra.mxu0 0.0
        %564 = vmatprep.subr.mxu0 0.0
        %565 = vmatpush2.xpose.msra.mxu0 0.0
        %566 = vmatprep.subr.mxu0 0.0
        %567 = vmatpush2.xpose.msra.mxu0 0.0
        %568 = vmatprep.mubr.f32.mxu0 0.0
        %569 = vmatmul.mubr.f32.gmra.mxu0 %v430
        %v570 = vpop.f32.mrf.mxu0
        %v571 = vadd.f32 0.0, %v570
        %v572 = vpop.f32.mrf.mxu0
        %573 = vdwg.mxu0
        %vm574 = vcmask 64512
        %575 = vst.msk [vmem:[%s288] sm:$0xff] %vm574, %v571
        %v576 = vld [vmem:[%s296] sm:$0xff]
        %v577 = vmul.f32 %v571, %v576
        %v578 = vmul.f32 %v577, 0.17677669
        %v579 = vsel %vm574, %v578, -inf
        %580 = vmax.xlane.f32.xlu0 %v579
        %v581 = vpop.xlane.xlu0 %580
        %v582 = vsub.f32 %v578, %v581
        %v583 = vmul.f32 %v582, 1.442695
        %v584 = vpow.pop %v583
        %v585 = vsel %vm574, %v584, 0.0
        %586 = vadd.xlane.f32.xlu0 %v585
        %v587 = vpop.xlane.xlu0 %586
        %v588 = vrcp.pop %v587
        %v589 = vmul.f32 %v584, %v588
        %590 = vst.msk [vmem:[%s281] sm:$0xff] %vm574, %v589
        %v592 = vsel %vm574, %v589, 0
        %594 = vmatprep.subr.mxu0 0.0
        %595 = vmatpush1.msra.mxu0 0.0
        %596 = vmatprep.subr.mxu0 0.0
        %597 = vmatpush1.msra.mxu0 0.0
        %598 = vmatprep.subr.mxu0 0.0
        %599 = vmatpush1.msra.mxu0 0.0
        %600 = vmatprep.subr.mxu0 0.0
        %601 = vmatpush1.msra.mxu0 0.0
        %602 = vmatprep.subr.mxu0 0.0
        %603 = vmatpush1.msra.mxu0 0.0
        %604 = vmatprep.subr.mxu0 0.0
        %605 = vmatpush1.msra.mxu0 0.0
        %606 = vmatprep.subr.mxu0 0.0
        %607 = vmatpush1.msra.mxu0 0.0
        %608 = vmatprep.subr.mxu0 0.0
        %609 = vmatpush1.msra.mxu0 0.0
        %610 = vmatprep.subr.mxu0 0.0
        %611 = vmatpush1.msra.mxu0 0.0
        %612 = vmatprep.subr.mxu0 0.0
        %613 = vmatpush1.msra.mxu0 0.0
        %614 = vmatprep.subr.mxu0 0.0
        %615 = vmatpush1.msra.mxu0 0.0
        %616 = vmatprep.subr.mxu0 0.0
        %617 = vmatpush1.msra.mxu0 0.0
        %618 = vmatprep.subr.mxu0 0.0
        %619 = vmatpush1.msra.mxu0 0.0
        %620 = vmatprep.subr.mxu0 0.0
        %621 = vmatpush1.msra.mxu0 0.0
        %622 = vmatprep.subr.mxu0 0.0
        %623 = vmatpush1.msra.mxu0 0.0
        %624 = vmatprep.subr.mxu0 0.0
        %625 = vmatpush1.msra.mxu0 %v501
        %626 = vmatprep.subr.mxu0 0.0
        %627 = vmatpush2.msra.mxu0 0.0
        %628 = vmatprep.subr.mxu0 0.0
        %629 = vmatpush2.msra.mxu0 0.0
        %630 = vmatprep.subr.mxu0 0.0
        %631 = vmatpush2.msra.mxu0 0.0
        %632 = vmatprep.subr.mxu0 0.0
        %633 = vmatpush2.msra.mxu0 0.0
        %634 = vmatprep.subr.mxu0 0.0
        %635 = vmatpush2.msra.mxu0 0.0
        %636 = vmatprep.subr.mxu0 0.0
        %637 = vmatpush2.msra.mxu0 0.0
        %638 = vmatprep.subr.mxu0 0.0
        %639 = vmatpush2.msra.mxu0 0.0
        %640 = vmatprep.subr.mxu0 0.0
        %641 = vmatpush2.msra.mxu0 0.0
        %642 = vmatprep.subr.mxu0 0.0
        %643 = vmatpush2.msra.mxu0 0.0
        %644 = vmatprep.subr.mxu0 0.0
        %645 = vmatpush2.msra.mxu0 0.0
        %646 = vmatprep.subr.mxu0 0.0
        %647 = vmatpush2.msra.mxu0 0.0
        %648 = vmatprep.subr.mxu0 0.0
        %649 = vmatpush2.msra.mxu0 0.0
        %650 = vmatprep.subr.mxu0 0.0
        %651 = vmatpush2.msra.mxu0 0.0
        %652 = vmatprep.subr.mxu0 0.0
        %653 = vmatpush2.msra.mxu0 0.0
        %654 = vmatprep.subr.mxu0 0.0
        %655 = vmatpush2.msra.mxu0 0.0
        %656 = vmatprep.subr.mxu0 0.0
        %657 = vmatpush2.msra.mxu0 0.0
        %658 = vmatprep.mubr.f32.mxu0 0.0
        %659 = vmatmul.mubr.f32.gmra.mxu0 %v592
        %v660 = vpop.f32.mrf.mxu0
        %v661 = vadd.f32 0.0, %v660
        %v662 = vpop.f32.mrf.mxu0
        %663 = vdwg.mxu0
        %664 = vst [vmem:[%s274] sm:$0xff] %v661
        %s665 = sand.u32 %s127, 1
        %s666 = scalar_lea.sflag [#allocation4], %s665
        %s667 = sand.u32 %s127, 1
        %s668 = smul.addr %s667, 8
        %s669 = scalar_lea.vmem [#allocation5], %s668
        %s670 = sand.u32 %s25, 1
        %s671 = scalar_lea.sflag [#allocation7], %s670
        %s672 = sand.u32 %s153, 1
        %s673 = smul.addr %s672, 8
        %s674 = scalar_lea.vmem [#allocation6], %s673
        %s675 = sand.u32 %s25, 1
        %s676 = scalar_lea.sflag [#allocation7], %s675
        %s677 = sand.u32 %s179, 1
        %s678 = smul.addr %s677, 8
        %s679 = scalar_lea.vmem [#allocation8], %s678
        // Predicated region
        $region41: #{mixed_self_attention.1} parent=35 // pred_check
          %p680 = pneg %p137
        $region42: #{mixed_self_attention.1} parent=35 // pred_check_branch
          %682 = sbr.rel (%p680) target = $region44
        $region43: #{mixed_self_attention.1} parent=35 // pred_region
          %s684 = ssub.s32 128, 128
          %685 = vsyncadd %s666, %s684
          %s686 = smul.addr %s25, 128
          %s687 = scalar_lea.hbm %s4, %s686
          %s689 = sshll.u32 %s669, 4
          %s690 = int_to_ptr.vmem [resolvable:$true] %s689
          %692 = dma.vmem_to_hbm [thread:$0]  %s690, 128, %s687, %s666
        $region44: #{mixed_self_attention.1} parent=35 // pred_fallthru
          _
        // Predicated region
        $region45: #{mixed_self_attention.1} parent=35 // pred_check
          %p693 = pneg %p163
        $region46: #{mixed_self_attention.1} parent=35 // pred_check_branch
          %695 = sbr.rel (%p693) target = $region48
        $region47: #{mixed_self_attention.1} parent=35 // pred_region
          %s697 = ssub.s32 128, 128
          %698 = vsyncadd %s671, %s697
          %s699 = smul.addr %s25, 128
          %s700 = scalar_lea.hbm %s5, %s699
          %s702 = sshll.u32 %s674, 4
          %s703 = int_to_ptr.vmem [resolvable:$true] %s702
          %705 = dma.vmem_to_hbm [thread:$0]  %s703, 128, %s700, %s671
        $region48: #{mixed_self_attention.1} parent=35 // pred_fallthru
          _
        // Predicated region
        $region49: #{mixed_self_attention.1} parent=35 // pred_check
          %p706 = pneg %p189
        $region50: #{mixed_self_attention.1} parent=35 // pred_check_branch
          %708 = sbr.rel (%p706) target = $region52
        $region51: #{mixed_self_attention.1} parent=35 // pred_region
          %s710 = ssub.s32 128, 128
          %711 = vsyncadd %s676, %s710
          %s712 = smul.addr %s25, 128
          %s713 = scalar_lea.hbm %s6, %s712
          %s715 = sshll.u32 %s679, 4
          %s716 = int_to_ptr.vmem [resolvable:$true] %s715
          %718 = dma.vmem_to_hbm [thread:$0]  %s716, 128, %s713, %s676
        $region52: #{mixed_self_attention.1} parent=35 // pred_fallthru
          _
      $region36: #{mixed_self_attention.1} parent=5 // pred_fallthru
        _
      %p719 = scmp.le.s32.totalorder 2, %s20
      // Predicated region
      $region53: #{mixed_self_attention.1} parent=5 // pred_check
        %p720 = pneg %p719
      $region54: #{mixed_self_attention.1} parent=5 // pred_check_branch
        %722 = sbr.rel (%p720) target = $region56
      $region55: #{mixed_self_attention.1} parent=5 // pred_region
        %s723 = ssub.s32 %s20, 2
        // Predicated region
        $region57: #{mixed_self_attention.1} parent=55 // pred_check
          %p724 = pneg %p143
        $region58: #{mixed_self_attention.1} parent=55 // pred_check_branch
          %726 = sbr.rel (%p724) target = $region60
        $region59: #{mixed_self_attention.1} parent=55 // pred_region
          %s727 = sand.u32 %s128, 1
          %s728 = scalar_lea.sflag [#allocation4], %s727
          %s729 = sand.u32 %s128, 1
          %s730 = smul.addr %s729, 8
          %s731 = scalar_lea.vmem [#allocation5], %s730
          %732 = dma.done %s728, 128
        $region60: #{mixed_self_attention.1} parent=55 // pred_fallthru
          _
        // Predicated region
        $region61: #{mixed_self_attention.1} parent=55 // pred_check
          %p733 = pneg %p169
        $region62: #{mixed_self_attention.1} parent=55 // pred_check_branch
          %735 = sbr.rel (%p733) target = $region64
        $region63: #{mixed_self_attention.1} parent=55 // pred_region
          %s736 = sand.u32 %s26, 1
          %s737 = scalar_lea.sflag [#allocation7], %s736
          %s738 = sand.u32 %s154, 1
          %s739 = smul.addr %s738, 8
          %s740 = scalar_lea.vmem [#allocation6], %s739
          %741 = dma.done %s737, 128
        $region64: #{mixed_self_attention.1} parent=55 // pred_fallthru
          _
        // Predicated region
        $region65: #{mixed_self_attention.1} parent=55 // pred_check
          %p742 = pneg %p195
        $region66: #{mixed_self_attention.1} parent=55 // pred_check_branch
          %744 = sbr.rel (%p742) target = $region68
        $region67: #{mixed_self_attention.1} parent=55 // pred_region
          %s745 = sand.u32 %s26, 1
          %s746 = scalar_lea.sflag [#allocation7], %s745
          %s747 = sand.u32 %s180, 1
          %s748 = smul.addr %s747, 8
          %s749 = scalar_lea.vmem [#allocation8], %s748
          %750 = dma.done %s746, 128
        $region68: #{mixed_self_attention.1} parent=55 // pred_fallthru
          _
      $region56: #{mixed_self_attention.1} parent=5 // pred_fallthru
        _
    $region6: #{mixed_self_attention.1} parent=1 // loop_footer
      %s24 = sadd.s32 1, %s20
    $region7: #{mixed_self_attention.1} parent=1 // loop_footer_branch
      %19 = sbr.rel target = $region3
    $region8: #{mixed_self_attention.1} parent=1 // loop_exit
      _
    %751 = vsyncpa [#allocation3], 1
    %s752 = scalar_lea.sflag [#allocation3], 1
    %753 = vsyncpa %s752, 1
    %754 = vsyncpa [#allocation4], 1
    %s755 = scalar_lea.sflag [#allocation4], 1
    %756 = vsyncpa %s755, 1
    %757 = vsyncpa [#allocation7], 1
    %s758 = scalar_lea.sflag [#allocation7], 1
    %759 = vsyncpa %s758, 1

</llo_original>
